<compile_context>
chip_gen: v7x
topology: tpu7x:2x2x1
jax: 0.10.0
libtpu: 0.0.40
codegen_flags: <defaults>
</compile_context>

<pallas_src>
import jax
import jax.numpy as jnp
from jax.experimental import pallas as pl
from jax.experimental.pallas import tpu as pltpu


def trafficnet_kernel(x_ref, w1_ref, b1_ref, w2_ref, b2_ref, o_ref):
    # In-kernel cast to bf16 (VPU); avoids a separate host-side cast pass and
    # keeps the HBM read at the real f32 (B, K) bytes.
    x = x_ref[...].astype(jnp.bfloat16)

    # Layer 1: bf16 MXU matmul, f32 accumulate; bias + ReLU in f32 on the VPU.
    h = jnp.dot(x, w1_ref[...], preferred_element_type=jnp.float32)
    h = jnp.maximum(h + b1_ref[...], 0.0)            # b1: (1, H_pad) broadcast

    # Layer 2: hidden activation stays in vregs; bf16 into the MXU, f32 acc.
    y = jnp.dot(h.astype(jnp.bfloat16), w2_ref[...],
                preferred_element_type=jnp.float32)
    y = y + b2_ref[...]                               # b2: (1, O) broadcast

    # Exact sigmoid via tanh: sigmoid(y) = 0.5 * (1 + tanh(y/2)).
    # Single EUP op per vreg; stays in f32.
    o_ref[...] = 0.5 * (1.0 + jnp.tanh(0.5 * y))


def _round_up(n, m):
    return ((n + m - 1) // m) * m


def trafficnet_forward(x, w1, b1, w2, b2, *, max_block_m=1024):
    """Fused 2-layer MLP forward.

    x : (B, K) f32.  Weights are stored [in, out] (transposed relative to
    nn.Linear's [out, in]); biases are 1-D.  Returns (B, O) f32.
    """
    B, K = x.shape
    H = w1.shape[1]
    O = w2.shape[1]
    H_pad = _round_up(H, 128)

    # Weights are tiny and constant: pad only the hidden dim to 128 so the
    # hidden activation is lane-dense.  Zero padding is exact (ReLU(0) = 0 and
    # the zero rows of w2 contribute nothing).  x / out stay unpadded in HBM.
    w1p = jnp.pad(w1, ((0, 0), (0, H_pad - H))).astype(jnp.bfloat16)
    w2p = jnp.pad(w2, ((0, H_pad - H), (0, 0))).astype(jnp.bfloat16)
    b1p = jnp.pad(b1.astype(jnp.float32).reshape(1, -1),
                  ((0, 0), (0, H_pad - H)))
    b2p = b2.astype(jnp.float32).reshape(1, -1)

    out_shape = jax.ShapeDtypeStruct((B, O), jnp.float32)

    cost = pl.CostEstimate(
        flops=2 * B * (K * H_pad + H_pad * O),
        transcendentals=B * O,
        bytes_accessed=(B * K * 4            # x (f32, unpadded)
                        + K * H_pad * 2      # w1 (bf16)
                        + H_pad * 4          # b1
                        + H_pad * O * 2      # w2 (bf16)
                        + O * 4              # b2
                        + B * O * 4),        # out (f32, unpadded)
    )

    if B <= max_block_m:
        # Single invocation: no grid / pipeline scaffolding; everything sits
        # whole in VMEM (a few hundred KB at most in this regime).
        vmem = pl.BlockSpec(memory_space=pltpu.MemorySpace.VMEM)
        return pl.pallas_call(
            trafficnet_kernel,
            out_shape=out_shape,
            in_specs=[vmem, vmem, vmem, vmem, vmem],
            out_specs=vmem,
            cost_estimate=cost,
        )(x, w1p, b1p, w2p, b2p)

    # Batch-tiled path: even step count (balanced across v7x's two TCs) with
    # block_m derived from B so padding is only the ragged last block (handled
    # by Pallas bounds clipping -- OOB reads unused, OOB writes dropped).
    nb = 4
    block_m = _round_up(pl.cdiv(B, nb), 8)
    while block_m > max_block_m:
        nb += 2
        block_m = _round_up(pl.cdiv(B, nb), 8)
    grid = (pl.cdiv(B, block_m),)

    return pl.pallas_call(
        trafficnet_kernel,
        out_shape=out_shape,
        grid=grid,
        in_specs=[
            pl.BlockSpec((block_m, K), lambda i: (i, 0)),   # x: row-tiled
            pl.BlockSpec((K, H_pad), lambda i: (0, 0)),     # weights resident
            pl.BlockSpec((1, H_pad), lambda i: (0, 0)),
            pl.BlockSpec((H_pad, O), lambda i: (0, 0)),
            pl.BlockSpec((1, O), lambda i: (0, 0)),
        ],
        out_specs=pl.BlockSpec((block_m, O), lambda i: (i, 0)),
        compiler_params=pltpu.CompilerParams(
            dimension_semantics=("parallel",)),   # megacore split on v7x
        cost_estimate=cost,
    )(x, w1p, b1p, w2p, b2p)


def init_params(key, input_size, hidden_size, output_size):
    """Deterministic init mimicking nn.Linear's uniform(-1/sqrt(fan_in), ...)."""
    k1, k2, k3, k4 = jax.random.split(key, 4)
    bound1 = 1.0 / jnp.sqrt(input_size)
    bound2 = 1.0 / jnp.sqrt(hidden_size)
    # Stored pre-transposed as [in, out] for the kernel's x @ W convention.
    w1 = jax.random.uniform(k1, (input_size, hidden_size), jnp.float32,
                            -bound1, bound1)
    b1 = jax.random.uniform(k2, (hidden_size,), jnp.float32, -bound1, bound1)
    w2 = jax.random.uniform(k3, (hidden_size, output_size), jnp.float32,
                            -bound2, bound2)
    b2 = jax.random.uniform(k4, (output_size,), jnp.float32, -bound2, bound2)
    return w1, b1, w2, b2


def _reference_f32(x, w1, b1, w2, b2):
    h = jnp.maximum(x @ w1 + b1.reshape(1, -1), 0.0)
    return jax.nn.sigmoid(h @ w2 + b2.reshape(1, -1))


def _reference_bf16(x, w1, b1, w2, b2):
    # Mirrors the kernel's bf16-MXU / f32-accumulate arithmetic.
    h = jnp.dot(x.astype(jnp.bfloat16), w1.astype(jnp.bfloat16),
                preferred_element_type=jnp.float32) + b1.reshape(1, -1)
    h = jnp.maximum(h, 0.0)
    y = jnp.dot(h.astype(jnp.bfloat16), w2.astype(jnp.bfloat16),
                preferred_element_type=jnp.float32) + b2.reshape(1, -1)
    return jax.nn.sigmoid(y)


if __name__ == "__main__":
    input_size, hidden_size, output_size = 16, 32, 8
    batch = 8

    key = jax.random.PRNGKey(0)
    kx, kp = jax.random.split(key)
    x = jax.random.normal(kx, (batch, input_size), dtype=jnp.float32)
    w1, b1, w2, b2 = init_params(kp, input_size, hidden_size, output_size)

    # Small batch -> exercises the no-grid (whole-array-in-VMEM) path.
    out = jax.block_until_ready(trafficnet_forward(x, w1, b1, w2, b2))
    assert out.shape == (batch, output_size)
    assert jnp.allclose(out, _reference_bf16(x, w1, b1, w2, b2),
                        atol=1e-2, rtol=1e-2)
    assert jnp.allclose(out, _reference_f32(x, w1, b1, w2, b2),
                        atol=3e-2, rtol=3e-2)

    # Larger, non-multiple batch -> exercises the batch-tiled path
    # (even step count, resident weights, ragged last block clipped).
    big_batch = 2088
    x_big = jax.random.normal(kx, (big_batch, input_size), dtype=jnp.float32)
    out_big = jax.block_until_ready(trafficnet_forward(x_big, w1, b1, w2, b2))
    assert out_big.shape == (big_batch, output_size)
    assert jnp.allclose(out_big, _reference_bf16(x_big, w1, b1, w2, b2),
                        atol=1e-2, rtol=1e-2)

    print("KERNEL_OK")
</pallas_src>

<mosaic_0001>
module attributes {stable_mosaic.version = 11 : i64} {
  func.func @trafficnet_kernel(%arg0: memref<8x16xf32, #tpu.memory_space<vmem>>, %arg1: memref<16x128xbf16, #tpu.memory_space<vmem>>, %arg2: memref<1x128xf32, #tpu.memory_space<vmem>>, %arg3: memref<128x8xbf16, #tpu.memory_space<vmem>>, %arg4: memref<1x8xf32, #tpu.memory_space<vmem>>, %arg5: memref<8x8xf32, #tpu.memory_space<vmem>>) attributes {dimension_semantics = [], scalar_prefetch = 0 : i64, scratch_operands = 0 : i64, tpu.core_type = #tpu.core_type<tc>} {
    %c0 = arith.constant 0 : index
    %c0_0 = arith.constant 0 : index
    %0 = vector.load %arg0[%c0, %c0_0] : memref<8x16xf32, #tpu.memory_space<vmem>>, vector<8x16xf32>
    %1 = arith.truncf %0 : vector<8x16xf32> to vector<8x16xbf16>
    %c0_1 = arith.constant 0 : index
    %c0_2 = arith.constant 0 : index
    %2 = vector.load %arg1[%c0_1, %c0_2] : memref<16x128xbf16, #tpu.memory_space<vmem>>, vector<16x128xbf16>
    %cst = arith.constant dense<0.000000e+00> : vector<8x128xf32>
    %3 = tpu.matmul %1, %2, %cst {dimension_numbers = #tpu.dot_dimension_numbers<[1], [0], [0], [1], [0, 0, 1, 1], [], []>} : vector<8x16xbf16>, vector<16x128xbf16>, vector<8x128xf32> -> vector<8x128xf32>
    %c0_3 = arith.constant 0 : index
    %c0_4 = arith.constant 0 : index
    %4 = vector.load %arg2[%c0_3, %c0_4] : memref<1x128xf32, #tpu.memory_space<vmem>>, vector<1x128xf32>
    %5 = vector.broadcast %4 : vector<1x128xf32> to vector<8x128xf32>
    %6 = arith.addf %3, %5 : vector<8x128xf32>
    %cst_5 = arith.constant 0.000000e+00 : f32
    %7 = vector.broadcast %cst_5 : f32 to vector<8x128xf32>
    %8 = arith.maximumf %6, %7 : vector<8x128xf32>
    %9 = arith.truncf %8 : vector<8x128xf32> to vector<8x128xbf16>
    %c0_6 = arith.constant 0 : index
    %c0_7 = arith.constant 0 : index
    %10 = vector.load %arg3[%c0_6, %c0_7] : memref<128x8xbf16, #tpu.memory_space<vmem>>, vector<128x8xbf16>
    %cst_8 = arith.constant dense<0.000000e+00> : vector<8x8xf32>
    %11 = tpu.matmul %9, %10, %cst_8 {dimension_numbers = #tpu.dot_dimension_numbers<[1], [0], [0], [1], [0, 0, 1, 1], [], []>} : vector<8x128xbf16>, vector<128x8xbf16>, vector<8x8xf32> -> vector<8x8xf32>
    %c0_9 = arith.constant 0 : index
    %c0_10 = arith.constant 0 : index
    %12 = vector.load %arg4[%c0_9, %c0_10] : memref<1x8xf32, #tpu.memory_space<vmem>>, vector<1x8xf32>
    %13 = vector.broadcast %12 : vector<1x8xf32> to vector<8x8xf32>
    %14 = arith.addf %11, %13 : vector<8x8xf32>
    %cst_11 = arith.constant 5.000000e-01 : f32
    %15 = vector.broadcast %cst_11 : f32 to vector<8x8xf32>
    %16 = arith.mulf %15, %14 : vector<8x8xf32>
    %17 = math.tanh %16 : vector<8x8xf32>
    %cst_12 = arith.constant 1.000000e+00 : f32
    %18 = vector.broadcast %cst_12 : f32 to vector<8x8xf32>
    %19 = arith.addf %18, %17 : vector<8x8xf32>
    %cst_13 = arith.constant 5.000000e-01 : f32
    %20 = vector.broadcast %cst_13 : f32 to vector<8x8xf32>
    %21 = arith.mulf %20, %19 : vector<8x8xf32>
    %c0_14 = arith.constant 0 : index
    %c0_15 = arith.constant 0 : index
    %22 = vector.load %arg5[%c0_14, %c0_15] : memref<8x8xf32, #tpu.memory_space<vmem>>, vector<8x8xf32>
    tpu.vector_store %arg5[%c0_14, %c0_15], %21 {strides = array<i32>} : memref<8x8xf32, #tpu.memory_space<vmem>>, vector<8x8xf32>,
    return
  }
}

</mosaic_0001>

<llo_original>
// kernel: tpu_custom_call.1
$region0: #{tpu_custom_call.1}
  #allocation0 [shape = 'u32[]', space=smem, size = 0x4, offset = 0x4, fixed_abs, tag = 'smem constant byte address 0x4 - core index']
  #allocation1 [shape = 'u32[144,128]{1,0:T(1,128)}', space=vmem, size = 0x12000, scoped, tag = 'internal scratch']
  %s0 = inlined_call_operand.vmem [shape: f32[8,16], index: 0, kind: input, shape index: {}]
  %s1 = inlined_call_operand.vmem [shape: bf16[16,128], index: 1, kind: input, shape index: {}]
  %s2 = inlined_call_operand.vmem [shape: f32[1,128], index: 2, kind: input, shape index: {}]
  %s3 = inlined_call_operand.vmem [shape: bf16[128,8], index: 3, kind: input, shape index: {}]
  %s4 = inlined_call_operand.vmem [shape: f32[1,8], index: 4, kind: input, shape index: {}]
  %s5 = inlined_call_operand.hbm [shape: f32[8,8], index: 5, kind: output, shape index: {}]
  %s6 = sld [smem:[#allocation0]]
  $region30: #{tpu_custom_call.1} parent=0
    _
  %s8 = ssub.s32 1, %s6
  %s9 = scalar_select 0, %s8, %s6
  $region1: #{tpu_custom_call.1} parent=0
    #allocation2 [shape = 'u8[4096]{0}', space=vmem, size = 0x1000, scoped, tag = 'output window, operand 0, single buffered']
    #allocation3 [shape = 's32[1]{0}', space=sflag, size = 0x4, scoped, tag = 'scoped memory for tpu_custom_call.1']
    %10 = vsyncpa [#allocation3], 0
    // Predicated region
    $region2: #{tpu_custom_call.1} parent=1 // pred_check
      _
    $region3: #{tpu_custom_call.1} parent=1 // pred_check_branch
      %12 = sbr.rel (0) target = $region5
    $region4: #{tpu_custom_call.1} parent=1 // pred_region
      _
    $region5: #{tpu_custom_call.1} parent=1 // pred_fallthru
      _
    // Predicated region
    $region6: #{tpu_custom_call.1} parent=1 // pred_check
      _
    $region7: #{tpu_custom_call.1} parent=1 // pred_check_branch
      %14 = sbr.rel (0) target = $region9
    $region8: #{tpu_custom_call.1} parent=1 // pred_region
      _
    $region9: #{tpu_custom_call.1} parent=1 // pred_fallthru
      _
    // Predicated region
    $region10: #{tpu_custom_call.1} parent=1 // pred_check
      _
    $region11: #{tpu_custom_call.1} parent=1 // pred_check_branch
      %16 = sbr.rel (0) target = $region13
    $region12: #{tpu_custom_call.1} parent=1 // pred_region
      _
    $region13: #{tpu_custom_call.1} parent=1 // pred_fallthru
      _
    // Predicated region
    $region14: #{tpu_custom_call.1} parent=1 // pred_check
      _
    $region15: #{tpu_custom_call.1} parent=1 // pred_check_branch
      %18 = sbr.rel (0) target = $region17
    $region16: #{tpu_custom_call.1} parent=1 // pred_region
      _
    $region17: #{tpu_custom_call.1} parent=1 // pred_fallthru
      _
    // Predicated region
    $region18: #{tpu_custom_call.1} parent=1 // pred_check
      _
    $region19: #{tpu_custom_call.1} parent=1 // pred_check_branch
      %20 = sbr.rel (0) target = $region21
    $region20: #{tpu_custom_call.1} parent=1 // pred_region
      _
    $region21: #{tpu_custom_call.1} parent=1 // pred_fallthru
      _
    %v22 = vld [vmem:[%s0] sm:$0xff]
    %v23 = vpack.c.bf16 %v22, %v22
    %v24 = vld [vmem:[%s1] sm:$0xf]
    %v25 = vld [vmem:[%s1 + $0x4] sm:$0xf]
    %v26 = vld [vmem:[%s2] sm:$0x1]
    %v28 = vlaneseq
    %v29 = vshrl.u32 %v28, 7
    %v30 = vsub.s32 0, %v29
    %v31 = vrot.slane %v26, %v30
    %v35 = vunpack.c.l.b16 %v24
    %v36 = vunpack.c.l.b16 %v25
    %v37 = vpack.c.b16 %v36, %v35
    %vm39 = vcmask 130048
    %v41 = vsel %vm39, %v23, 0
    %43 = vmatprep.subr.bf16.mxu0 0
    %44 = vmatpush1.bf16.msra.mxu0 %v37
    %45 = vmatprep.subr.bf16.mxu0 0
    %46 = vmatpush1.bf16.msra.mxu0 0
    %47 = vmatprep.subr.bf16.mxu0 0
    %48 = vmatpush1.bf16.msra.mxu0 0
    %49 = vmatprep.subr.bf16.mxu0 0
    %50 = vmatpush1.bf16.msra.mxu0 0
    %51 = vmatprep.subr.bf16.mxu0 0
    %52 = vmatpush1.bf16.msra.mxu0 0
    %53 = vmatprep.subr.bf16.mxu0 0
    %54 = vmatpush1.bf16.msra.mxu0 0
    %55 = vmatprep.subr.bf16.mxu0 0
    %56 = vmatpush1.bf16.msra.mxu0 0
    %57 = vmatprep.subr.bf16.mxu0 0
    %58 = vmatpush1.bf16.msra.mxu0 0
    %59 = vmatprep.subr.bf16.mxu0 0
    %60 = vmatpush1.bf16.msra.mxu0 0
    %61 = vmatprep.subr.bf16.mxu0 0
    %62 = vmatpush1.bf16.msra.mxu0 0
    %63 = vmatprep.subr.bf16.mxu0 0
    %64 = vmatpush1.bf16.msra.mxu0 0
    %65 = vmatprep.subr.bf16.mxu0 0
    %66 = vmatpush1.bf16.msra.mxu0 0
    %67 = vmatprep.subr.bf16.mxu0 0
    %68 = vmatpush1.bf16.msra.mxu0 0
    %69 = vmatprep.subr.bf16.mxu0 0
    %70 = vmatpush1.bf16.msra.mxu0 0
    %71 = vmatprep.subr.bf16.mxu0 0
    %72 = vmatpush1.bf16.msra.mxu0 0
    %73 = vmatprep.subr.bf16.mxu0 0
    %74 = vmatpush1.bf16.msra.mxu0 0
    %75 = vmatprep.mubr.bf16.mxu0 0
    %76 = vmatmul.mubr.bf16.gmra.mrb[0].mxu0 %v41
    %v77 = vpop.f32.mrb[0].mxu0
    %v78 = vadd.f32 %v31, %v77
    %v79 = vpop.f32.mrb[0].mxu0
    %v80 = vpop.f32.mrb[0].mxu0
    %v81 = vpop.f32.mrb[0].mxu0
    %82 = vdwg.mxu0
    %v83 = vmax.f32 %v78, 0.0
    %v84 = vpack.c.bf16 %v83, %v83
    %v85 = vld [vmem:[%s3] sm:$0xf]
    %v86 = vld [vmem:[%s3 + $0x4] sm:$0xf]
    %v87 = vld [vmem:[%s3 + $0x8] sm:$0xf]
    %v88 = vld [vmem:[%s3 + $0xc] sm:$0xf]
    %v89 = vld [vmem:[%s3 + $0x10] sm:$0xf]
    %v90 = vld [vmem:[%s3 + $0x14] sm:$0xf]
    %v91 = vld [vmem:[%s3 + $0x18] sm:$0xf]
    %v92 = vld [vmem:[%s3 + $0x1c] sm:$0xf]
    %v93 = vld [vmem:[%s3 + $0x20] sm:$0xf]
    %v94 = vld [vmem:[%s3 + $0x24] sm:$0xf]
    %v95 = vld [vmem:[%s3 + $0x28] sm:$0xf]
    %v96 = vld [vmem:[%s3 + $0x2c] sm:$0xf]
    %v97 = vld [vmem:[%s3 + $0x30] sm:$0xf]
    %v98 = vld [vmem:[%s3 + $0x34] sm:$0xf]
    %v99 = vld [vmem:[%s3 + $0x38] sm:$0xf]
    %v100 = vld [vmem:[%s3 + $0x3c] sm:$0xf]
    %v101 = vld [vmem:[%s4] sm:$0x1]
    %v103 = vlaneseq
    %v104 = vshrl.u32 %v103, 7
    %v105 = vsub.s32 0, %v104
    %v106 = vrot.slane %v101, %v105
    %v124 = vunpack.c.l.b16 %v85
    %v125 = vunpack.c.l.b16 %v86
    %v126 = vunpack.c.l.b16 %v87
    %v127 = vunpack.c.l.b16 %v88
    %v128 = vunpack.c.l.b16 %v89
    %v129 = vunpack.c.l.b16 %v90
    %v130 = vunpack.c.l.b16 %v91
    %v131 = vunpack.c.l.b16 %v92
    %v132 = vunpack.c.l.b16 %v93
    %v133 = vunpack.c.l.b16 %v94
    %v134 = vunpack.c.l.b16 %v95
    %v135 = vunpack.c.l.b16 %v96
    %v136 = vunpack.c.l.b16 %v97
    %v137 = vunpack.c.l.b16 %v98
    %v138 = vunpack.c.l.b16 %v99
    %v139 = vunpack.c.l.b16 %v100
    %v140 = vpack.c.b16 %v125, %v124
    %v141 = vpack.c.b16 %v127, %v126
    %v142 = vpack.c.b16 %v129, %v128
    %v143 = vpack.c.b16 %v131, %v130
    %v144 = vpack.c.b16 %v133, %v132
    %v145 = vpack.c.b16 %v135, %v134
    %v146 = vpack.c.b16 %v137, %v136
    %v147 = vpack.c.b16 %v139, %v138
    %156 = vmatprep.subr.bf16.mxu0 0
    %157 = vmatpush1.bf16.msra.mxu0 %v140
    %158 = vmatprep.subr.bf16.mxu0 0
    %159 = vmatpush1.bf16.msra.mxu0 %v141
    %160 = vmatprep.subr.bf16.mxu0 0
    %161 = vmatpush1.bf16.msra.mxu0 %v142
    %162 = vmatprep.subr.bf16.mxu0 0
    %163 = vmatpush1.bf16.msra.mxu0 %v143
    %164 = vmatprep.subr.bf16.mxu0 0
    %165 = vmatpush1.bf16.msra.mxu0 %v144
    %166 = vmatprep.subr.bf16.mxu0 0
    %167 = vmatpush1.bf16.msra.mxu0 %v145
    %168 = vmatprep.subr.bf16.mxu0 0
    %169 = vmatpush1.bf16.msra.mxu0 %v146
    %170 = vmatprep.subr.bf16.mxu0 0
    %171 = vmatpush1.bf16.msra.mxu0 %v147
    %172 = vmatprep.subr.bf16.mxu0 0
    %173 = vmatpush1.bf16.msra.mxu0 0
    %174 = vmatprep.subr.bf16.mxu0 0
    %175 = vmatpush1.bf16.msra.mxu0 0
    %176 = vmatprep.subr.bf16.mxu0 0
    %177 = vmatpush1.bf16.msra.mxu0 0
    %178 = vmatprep.subr.bf16.mxu0 0
    %179 = vmatpush1.bf16.msra.mxu0 0
    %180 = vmatprep.subr.bf16.mxu0 0
    %181 = vmatpush1.bf16.msra.mxu0 0
    %182 = vmatprep.subr.bf16.mxu0 0
    %183 = vmatpush1.bf16.msra.mxu0 0
    %184 = vmatprep.subr.bf16.mxu0 0
    %185 = vmatpush1.bf16.msra.mxu0 0
    %186 = vmatprep.subr.bf16.mxu0 0
    %187 = vmatpush1.bf16.msra.mxu0 0
    %188 = vmatprep.mubr.bf16.mxu0 0
    %189 = vmatmul.mubr.bf16.gmra.mrb[0].mxu0 %v84
    %v190 = vpop.f32.mrb[0].mxu0
    %v191 = vadd.f32 %v106, %v190
    %v192 = vpop.f32.mrb[0].mxu0
    %v193 = vpop.f32.mrb[0].mxu0
    %v194 = vpop.f32.mrb[0].mxu0
    %195 = vdwg.mxu0
    %v196 = vmul.f32 %v191, 0.5
    %v197 = vtanh.pop %v196
    %v198 = vadd.f32 %v197, 1.0
    %v199 = vmul.f32 %v198, 0.5
    %vm200 = vcmask 64512
    %201 = vst.msk [vmem:[#allocation2] sm:$0xff] %vm200, %v199
    // Predicated region
    $region22: #{tpu_custom_call.1} parent=1 // pred_check
      _
    $region23: #{tpu_custom_call.1} parent=1 // pred_check_branch
      %203 = sbr.rel (0) target = $region25
    $region24: #{tpu_custom_call.1} parent=1 // pred_region
      %s205 = ssub.s32 128, 128
      %206 = vsyncadd [#allocation3], %s205
      %s208 = sshll.u32 [#allocation2], 4
      %s209 = int_to_ptr.vmem [resolvable:$true] %s208
      %211 = dma.vmem_to_hbm [thread:$0]  %s209, 128, %s5, [#allocation3]
    $region25: #{tpu_custom_call.1} parent=1 // pred_fallthru
      _
    // Predicated region
    $region26: #{tpu_custom_call.1} parent=1 // pred_check
      _
    $region27: #{tpu_custom_call.1} parent=1 // pred_check_branch
      %213 = sbr.rel (0) target = $region29
    $region28: #{tpu_custom_call.1} parent=1 // pred_region
      %214 = dma.done [#allocation3], 128
    $region29: #{tpu_custom_call.1} parent=1 // pred_fallthru
      _
    %215 = vsyncpa [#allocation3], 1

</llo_original>
